<compile_context>
chip_gen: v7x
topology: tpu7x:2x2x1
jax: 0.10.0
libtpu: 0.0.40
codegen_flags: <defaults>
</compile_context>

<pallas_src>
import functools

import numpy as np
import jax
import jax.numpy as jnp
from jax.experimental import pallas as pl
from jax.experimental.pallas import tpu as pltpu


def _round_up(x, m):
    return (x + m - 1) // m * m


# ---------------------------------------------------------------------------
# Kernel: batch-on-sublanes MLP, everything read from one packed param blob.
#   x_ref : (tn, D_in)     input row tile
#   p_ref : (rows, 128)    packed (scale-folded) weights/biases
#   o_ref : (tn, D_out)    output row tile
# ---------------------------------------------------------------------------
def _fnn_kernel(x_ref, p_ref, o_ref, *, D_in, H, D_out,
                off_b1, off_b2, off_b3, off_b4, off_w2, off_w3, off_w4):
    x = x_ref[...]                                      # (tn, D_in)

    # ---- layer 1 on the VPU: z1 = x @ w1^T + b1  (K = D_in is tiny) -------
    z1 = p_ref[off_b1:off_b1 + 1, 0:H]                  # (1, H) bias row
    for d in range(D_in):                               # static unroll
        z1 = z1 + x[:, d:d + 1] * p_ref[d:d + 1, 0:H]   # (tn,1)*(1,H) -> (tn,H)
    y = jnp.tanh(z1)                                    # (tn, H)

    # ---- layers 2..4 on the MXU: y @ W^T + b (rhs-transposed dot_general) -
    def dense(y_in, w_off, n_out, b_off):
        w = p_ref[w_off:w_off + n_out, 0:H]             # (n_out, H) PyTorch layout
        z = jax.lax.dot_general(y_in, w, (((1,), (1,)), ((), ())),
                                preferred_element_type=jnp.float32)
        return z + p_ref[b_off:b_off + 1, 0:n_out]      # (1, n_out) bias row

    y = jnp.tanh(dense(y, off_w2, H, off_b2))
    y = jnp.tanh(dense(y, off_w3, H, off_b3))
    y = dense(y, off_w4, D_out, off_b4)                 # (tn, D_out)
    o_ref[...] = y.astype(o_ref.dtype)


# ---------------------------------------------------------------------------
# Parameters (PyTorch-style layout) + one-time kernel-layout preparation.
# ---------------------------------------------------------------------------
def init_params(key, D_in, H, D_out):
    """Mirrors the PyTorch module's __init__ (normal weight/bias init, a=0.1)."""
    ks = jax.random.split(key, 8)

    def nrm(k, shape, std):
        return std * jax.random.normal(k, shape, dtype=jnp.float32)

    # PyTorch Linear weight layout: (out, in); bias: (out,)
    w1 = nrm(ks[0], (H, D_in),  np.sqrt(2.0 / (D_in + H)))
    w2 = nrm(ks[1], (H, H),     np.sqrt(2.0 / (H + H)))
    w3 = nrm(ks[2], (H, H),     np.sqrt(2.0 / (H + H)))
    w4 = nrm(ks[3], (D_out, H), np.sqrt(2.0 / (H + D_out)))
    b1 = nrm(ks[4], (H,), 1.0)
    b2 = nrm(ks[5], (H,), 1.0)
    b3 = nrm(ks[6], (H,), 1.0)
    b4 = nrm(ks[7], (D_out,), 1.0)
    a = jnp.float32(0.1)
    n = jnp.float32(1.0) / a                  # n = 1 / a.data
    return dict(w1=w1, b1=b1, w2=w2, b2=b2, w3=w3, b3=b3, w4=w4, b4=b4,
                a=a, n=n)


def prepare_kernel_params(p):
    """Pack scale-folded weights/biases into one lane-aligned f32 blob.

    Blob layout (rows x 128 lanes):
      rows [0, D_in)              : w1^T            (lanes 0:H)   -- VPU layer 1
      rows D_in, D_in+1, D_in+2   : b1, b2, b3 rows (lanes 0:H)
      row  D_in+3                 : b4 row          (lanes 0:D_out)
      rows [off_w2, off_w2+H)     : w2              (lanes 0:H)
      rows [off_w3, off_w3+H)     : w3              (lanes 0:H)
      rows [off_w4, off_w4+D_out) : w4              (lanes 0:H)

    The scale s = n*a is folded in; re-run this whenever `a` or any
    weight/bias is updated, otherwise the kernel uses stale parameters.
    """
    H, D_in = p["w1"].shape
    D_out = p["w4"].shape[0]
    s = (p["n"] * p["a"]).astype(jnp.float32)

    lanes = _round_up(max(H, D_in, D_out, 128), 128)
    off_b1, off_b2, off_b3, off_b4 = D_in, D_in + 1, D_in + 2, D_in + 3
    off_w2 = _round_up(D_in + 4, 8)
    off_w3 = off_w2 + _round_up(H, 8)
    off_w4 = off_w3 + _round_up(H, 8)
    rows = off_w4 + _round_up(D_out, 8)

    blob = jnp.zeros((rows, lanes), jnp.float32)
    blob = blob.at[0:D_in, 0:H].set((s * p["w1"]).T)
    blob = blob.at[off_b1, 0:H].set(s * p["b1"])
    blob = blob.at[off_b2, 0:H].set(s * p["b2"])
    blob = blob.at[off_b3, 0:H].set(s * p["b3"])
    blob = blob.at[off_b4, 0:D_out].set(s * p["b4"])
    blob = blob.at[off_w2:off_w2 + H, 0:H].set(s * p["w2"])
    blob = blob.at[off_w3:off_w3 + H, 0:H].set(s * p["w3"])
    blob = blob.at[off_w4:off_w4 + D_out, 0:H].set(s * p["w4"])

    meta = dict(D_in=D_in, H=H, D_out=D_out,
                off_b1=off_b1, off_b2=off_b2, off_b3=off_b3, off_b4=off_b4,
                off_w2=off_w2, off_w3=off_w3, off_w4=off_w4)
    return blob, meta


# ---------------------------------------------------------------------------
# Wrapper.
# ---------------------------------------------------------------------------
def _pick_col_tile(N):
    """Single grid step for small N (kernel is launch/overhead bound).
    If N grows, cap the row tile at 512 (vreg pressure from the (tn, H)
    intermediates) and iterate the grid; the 'parallel' axis lets megacore
    chips (v7x) shard large batches."""
    if N <= 512:
        return N
    for tn in (512, 256, 128):
        if N % tn == 0:
            return tn
    return N


def fnn_forward(x, blob, meta, *, tn=None):
    """x: (N, D_in) f32 -> (N, D_out) f32. blob/meta from prepare_kernel_params."""
    N, D_in = x.shape
    assert D_in == meta["D_in"]
    H, D_out = meta["H"], meta["D_out"]
    if tn is None:
        tn = _pick_col_tile(N)
    assert N % tn == 0 and (tn == N or tn % 8 == 0), "row tile must divide N (mult. of 8)"

    kernel = functools.partial(
        _fnn_kernel, D_in=D_in, H=H, D_out=D_out,
        off_b1=meta["off_b1"], off_b2=meta["off_b2"],
        off_b3=meta["off_b3"], off_b4=meta["off_b4"],
        off_w2=meta["off_w2"], off_w3=meta["off_w3"], off_w4=meta["off_w4"])

    return pl.pallas_call(
        kernel,
        out_shape=jax.ShapeDtypeStruct((N, D_out), jnp.float32),
        grid_spec=pltpu.PrefetchScalarGridSpec(
            num_scalar_prefetch=0,
            grid=(N // tn,),
            in_specs=[
                pl.BlockSpec((tn, D_in), lambda i: (i, 0)),    # input row tile
                pl.BlockSpec(blob.shape, lambda i: (0, 0)),    # whole param blob
            ],
            out_specs=pl.BlockSpec((tn, D_out), lambda i: (i, 0)),
        ),
        compiler_params=pltpu.CompilerParams(
            dimension_semantics=("parallel",)),
    )(x, blob)


def fnn_reference(x, p):
    """Pure-JAX reference matching the PyTorch forward."""
    s = p["n"] * p["a"]
    y1 = jnp.tanh(s * (x @ p["w1"].T + p["b1"]))
    y2 = jnp.tanh(s * (y1 @ p["w2"].T + p["b2"]))
    y3 = jnp.tanh(s * (y2 @ p["w3"].T + p["b3"]))
    return s * (y3 @ p["w4"].T + p["b4"])


if __name__ == "__main__":
    # DCEM hole-plate: 2-D coordinate inputs -> D_in=2, small hidden, 2 outputs.
    D_in, H, D_out = 2, 32, 2
    N = 256                                    # number of collocation points

    key = jax.random.PRNGKey(0)
    k_x, k_p = jax.random.split(key)
    x = jax.random.normal(k_x, (N, D_in), dtype=jnp.float32)

    params = init_params(k_p, D_in, H, D_out)
    blob, meta = prepare_kernel_params(params)  # one-time layout / scale fold

    y = fnn_forward(x, blob, meta)
    y = jax.block_until_ready(y)

    y_ref = fnn_reference(x, params)
    np.testing.assert_allclose(np.asarray(y), np.asarray(y_ref),
                               rtol=1e-5, atol=1e-5)
    print("KERNEL_OK")
</pallas_src>

<mosaic_0001>
module attributes {stable_mosaic.version = 11 : i64} {
  func.func @_fnn_kernel(%arg0: i32, %arg1: memref<256x2xf32, #tpu.memory_space<vmem>>, %arg2: memref<80x128xf32, #tpu.memory_space<vmem>>, %arg3: memref<256x2xf32, #tpu.memory_space<vmem>>) attributes {dimension_semantics = [#tpu.dimension_semantics<parallel>], iteration_bounds = array<i64: 1>, scalar_prefetch = 0 : i64, scratch_operands = 0 : i64, tpu.core_type = #tpu.core_type<tc>, window_params = [{transform_indices = @transform_0, window_bounds = array<i64: 256, 2>}, {pipeline_mode = #tpu.pipeline_mode<synchronous>, transform_indices = @transform_1, window_bounds = array<i64: 80, 128>}, {transform_indices = @transform_2, window_bounds = array<i64: 256, 2>}]} {
    %c0 = arith.constant 0 : index
    %c0_0 = arith.constant 0 : index
    %0 = vector.load %arg1[%c0, %c0_0] : memref<256x2xf32, #tpu.memory_space<vmem>>, vector<256x2xf32>
    %c2 = arith.constant 2 : index
    %c0_1 = arith.constant 0 : index
    %1 = vector.load %arg2[%c2, %c0_1] : memref<80x128xf32, #tpu.memory_space<vmem>>, vector<1x32xf32>
    %2 = vector.extract_strided_slice %0 {offsets = [0, 0], sizes = [256, 1], strides = [1, 1]} : vector<256x2xf32> to vector<256x1xf32>
    %c0_2 = arith.constant 0 : index
    %c0_3 = arith.constant 0 : index
    %3 = vector.load %arg2[%c0_2, %c0_3] : memref<80x128xf32, #tpu.memory_space<vmem>>, vector<1x32xf32>
    %4 = vector.broadcast %2 : vector<256x1xf32> to vector<256x32xf32>
    %5 = vector.broadcast %3 : vector<1x32xf32> to vector<256x32xf32>
    %6 = arith.mulf %4, %5 : vector<256x32xf32>
    %7 = vector.broadcast %1 : vector<1x32xf32> to vector<256x32xf32>
    %8 = arith.addf %7, %6 : vector<256x32xf32>
    %9 = vector.extract_strided_slice %0 {offsets = [0, 1], sizes = [256, 1], strides = [1, 1]} : vector<256x2xf32> to vector<256x1xf32>
    %c1 = arith.constant 1 : index
    %c0_4 = arith.constant 0 : index
    %10 = vector.load %arg2[%c1, %c0_4] : memref<80x128xf32, #tpu.memory_space<vmem>>, vector<1x32xf32>
    %11 = vector.broadcast %9 : vector<256x1xf32> to vector<256x32xf32>
    %12 = vector.broadcast %10 : vector<1x32xf32> to vector<256x32xf32>
    %13 = arith.mulf %11, %12 : vector<256x32xf32>
    %14 = arith.addf %8, %13 : vector<256x32xf32>
    %15 = math.tanh %14 : vector<256x32xf32>
    %c8 = arith.constant 8 : index
    %c0_5 = arith.constant 0 : index
    %16 = vector.load %arg2[%c8, %c0_5] : memref<80x128xf32, #tpu.memory_space<vmem>>, vector<32x32xf32>
    %cst = arith.constant dense<0.000000e+00> : vector<256x32xf32>
    %17 = tpu.matmul %15, %16, %cst {dimension_numbers = #tpu.dot_dimension_numbers<[1], [1], [0], [0], [0, 0, 1, 0], [], []>} : vector<256x32xf32>, vector<32x32xf32>, vector<256x32xf32> -> vector<256x32xf32>
    %c3 = arith.constant 3 : index
    %c0_6 = arith.constant 0 : index
    %18 = vector.load %arg2[%c3, %c0_6] : memref<80x128xf32, #tpu.memory_space<vmem>>, vector<1x32xf32>
    %19 = vector.broadcast %18 : vector<1x32xf32> to vector<256x32xf32>
    %20 = arith.addf %17, %19 : vector<256x32xf32>
    %21 = math.tanh %20 : vector<256x32xf32>
    %c40 = arith.constant 40 : index
    %c0_7 = arith.constant 0 : index
    %22 = vector.load %arg2[%c40, %c0_7] : memref<80x128xf32, #tpu.memory_space<vmem>>, vector<32x32xf32>
    %cst_8 = arith.constant dense<0.000000e+00> : vector<256x32xf32>
    %23 = tpu.matmul %21, %22, %cst_8 {dimension_numbers = #tpu.dot_dimension_numbers<[1], [1], [0], [0], [0, 0, 1, 0], [], []>} : vector<256x32xf32>, vector<32x32xf32>, vector<256x32xf32> -> vector<256x32xf32>
    %c4 = arith.constant 4 : index
    %c0_9 = arith.constant 0 : index
    %24 = vector.load %arg2[%c4, %c0_9] : memref<80x128xf32, #tpu.memory_space<vmem>>, vector<1x32xf32>
    %25 = vector.broadcast %24 : vector<1x32xf32> to vector<256x32xf32>
    %26 = arith.addf %23, %25 : vector<256x32xf32>
    %27 = math.tanh %26 : vector<256x32xf32>
    %c72 = arith.constant 72 : index
    %c0_10 = arith.constant 0 : index
    %28 = vector.load %arg2[%c72, %c0_10] : memref<80x128xf32, #tpu.memory_space<vmem>>, vector<2x32xf32>
    %cst_11 = arith.constant dense<0.000000e+00> : vector<256x2xf32>
    %29 = tpu.matmul %27, %28, %cst_11 {dimension_numbers = #tpu.dot_dimension_numbers<[1], [1], [0], [0], [0, 0, 1, 0], [], []>} : vector<256x32xf32>, vector<2x32xf32>, vector<256x2xf32> -> vector<256x2xf32>
    %c5 = arith.constant 5 : index
    %c0_12 = arith.constant 0 : index
    %30 = vector.load %arg2[%c5, %c0_12] : memref<80x128xf32, #tpu.memory_space<vmem>>, vector<1x2xf32>
    %31 = vector.broadcast %30 : vector<1x2xf32> to vector<256x2xf32>
    %32 = arith.addf %29, %31 : vector<256x2xf32>
    %c0_13 = arith.constant 0 : index
    %c0_14 = arith.constant 0 : index
    %33 = vector.load %arg3[%c0_13, %c0_14] : memref<256x2xf32, #tpu.memory_space<vmem>>, vector<256x2xf32>
    tpu.vector_store %arg3[%c0_13, %c0_14], %32 {strides = array<i32>} : memref<256x2xf32, #tpu.memory_space<vmem>>, vector<256x2xf32>,
    return
  }
  func.func @transform_0(%arg0: i32) -> (i32, i32) {
    %c0_i32 = arith.constant 0 : i32
    %c0_i32_0 = arith.constant 0 : i32
    return %arg0, %c0_i32 : i32, i32
  }
  func.func @transform_1(%arg0: i32) -> (i32, i32) {
    %c0_i32 = arith.constant 0 : i32
    %c0_i32_0 = arith.constant 0 : i32
    %c0_i32_1 = arith.constant 0 : i32
    return %c0_i32, %c0_i32_0 : i32, i32
  }
  func.func @transform_2(%arg0: i32) -> (i32, i32) {
    %c0_i32 = arith.constant 0 : i32
    %c0_i32_0 = arith.constant 0 : i32
    return %arg0, %c0_i32 : i32, i32
  }
}

</mosaic_0001>

<llo_original>
// kernel: tpu_custom_call.1
$region0: #{tpu_custom_call.1}
  #allocation0 [shape = 'u32[]', space=smem, size = 0x4, offset = 0x4, fixed_abs, tag = 'smem constant byte address 0x4 - core index']
  #allocation1 [shape = 'u32[144,128]{1,0:T(1,128)}', space=vmem, size = 0x12000, scoped, tag = 'internal scratch']
  %s0 = inlined_call_operand.vmem [shape: f32[256,2], index: 0, kind: input, shape index: {}]
  %s1 = inlined_call_operand.vmem [shape: f32[80,128], index: 1, kind: input, shape index: {}]
  %s2 = inlined_call_operand.vmem [shape: f32[256,2], index: 2, kind: output, shape index: {}]
  %s3 = sld [smem:[#allocation0]]
  $region18: #{tpu_custom_call.1} parent=0
    _
  %s5 = ssub.s32 1, %s3
  %s6 = scalar_select 0, %s5, %s3
  // Predicated region
  $region2: #{tpu_custom_call.1} parent=0 // pred_check
    _
  $region3: #{tpu_custom_call.1} parent=0 // pred_check_branch
    %8 = sbr.rel (0) target = $region5
  $region4: #{tpu_custom_call.1} parent=0 // pred_region
    _
  $region5: #{tpu_custom_call.1} parent=0 // pred_fallthru
    _
  // Predicated region
  $region6: #{tpu_custom_call.1} parent=0 // pred_check
    _
  $region7: #{tpu_custom_call.1} parent=0 // pred_check_branch
    %10 = sbr.rel (0) target = $region9
  $region8: #{tpu_custom_call.1} parent=0 // pred_region
    _
  $region9: #{tpu_custom_call.1} parent=0 // pred_fallthru
    _
  %v11 = vld [vmem:[%s0] sm:$0xff]
  %v12 = vld [vmem:[%s0 + $0x8] sm:$0xff]
  %v13 = vld [vmem:[%s0 + $0x10] sm:$0xff]
  %v14 = vld [vmem:[%s0 + $0x18] sm:$0xff]
  %v15 = vld [vmem:[%s0 + $0x20] sm:$0xff]
  %v16 = vld [vmem:[%s0 + $0x28] sm:$0xff]
  %v17 = vld [vmem:[%s0 + $0x30] sm:$0xff]
  %v18 = vld [vmem:[%s0 + $0x38] sm:$0xff]
  %v19 = vld [vmem:[%s0 + $0x40] sm:$0xff]
  %v20 = vld [vmem:[%s0 + $0x48] sm:$0xff]
  %v21 = vld [vmem:[%s0 + $0x50] sm:$0xff]
  %v22 = vld [vmem:[%s0 + $0x58] sm:$0xff]
  %v23 = vld [vmem:[%s0 + $0x60] sm:$0xff]
  %v24 = vld [vmem:[%s0 + $0x68] sm:$0xff]
  %v25 = vld [vmem:[%s0 + $0x70] sm:$0xff]
  %v26 = vld [vmem:[%s0 + $0x78] sm:$0xff]
  %v27 = vld [vmem:[%s0 + $0x80] sm:$0xff]
  %v28 = vld [vmem:[%s0 + $0x88] sm:$0xff]
  %v29 = vld [vmem:[%s0 + $0x90] sm:$0xff]
  %v30 = vld [vmem:[%s0 + $0x98] sm:$0xff]
  %v31 = vld [vmem:[%s0 + $0xa0] sm:$0xff]
  %v32 = vld [vmem:[%s0 + $0xa8] sm:$0xff]
  %v33 = vld [vmem:[%s0 + $0xb0] sm:$0xff]
  %v34 = vld [vmem:[%s0 + $0xb8] sm:$0xff]
  %v35 = vld [vmem:[%s0 + $0xc0] sm:$0xff]
  %v36 = vld [vmem:[%s0 + $0xc8] sm:$0xff]
  %v37 = vld [vmem:[%s0 + $0xd0] sm:$0xff]
  %v38 = vld [vmem:[%s0 + $0xd8] sm:$0xff]
  %v39 = vld [vmem:[%s0 + $0xe0] sm:$0xff]
  %v40 = vld [vmem:[%s0 + $0xe8] sm:$0xff]
  %v41 = vld [vmem:[%s0 + $0xf0] sm:$0xff]
  %v42 = vld [vmem:[%s0 + $0xf8] sm:$0xff]
  %v43 = vld [vmem:[%s1 + $0x2] sm:$0x1]
  %v44 = vld [vmem:[%s1] sm:$0x1]
  %46 = vset.pattern.permute.xlu0 0
  %47 = vperm.xlu0 %46, %v11
  %v48 = vpop.permute.xlu0 %47
  %51 = vset.pattern.permute.xlu0 0
  %52 = vperm.xlu0 %51, %v12
  %v53 = vpop.permute.xlu0 %52
  %56 = vset.pattern.permute.xlu0 0
  %57 = vperm.xlu0 %56, %v13
  %v58 = vpop.permute.xlu0 %57
  %61 = vset.pattern.permute.xlu0 0
  %62 = vperm.xlu0 %61, %v14
  %v63 = vpop.permute.xlu0 %62
  %66 = vset.pattern.permute.xlu0 0
  %67 = vperm.xlu0 %66, %v15
  %v68 = vpop.permute.xlu0 %67
  %71 = vset.pattern.permute.xlu0 0
  %72 = vperm.xlu0 %71, %v16
  %v73 = vpop.permute.xlu0 %72
  %76 = vset.pattern.permute.xlu0 0
  %77 = vperm.xlu0 %76, %v17
  %v78 = vpop.permute.xlu0 %77
  %81 = vset.pattern.permute.xlu0 0
  %82 = vperm.xlu0 %81, %v18
  %v83 = vpop.permute.xlu0 %82
  %86 = vset.pattern.permute.xlu0 0
  %87 = vperm.xlu0 %86, %v19
  %v88 = vpop.permute.xlu0 %87
  %91 = vset.pattern.permute.xlu0 0
  %92 = vperm.xlu0 %91, %v20
  %v93 = vpop.permute.xlu0 %92
  %96 = vset.pattern.permute.xlu0 0
  %97 = vperm.xlu0 %96, %v21
  %v98 = vpop.permute.xlu0 %97
  %101 = vset.pattern.permute.xlu0 0
  %102 = vperm.xlu0 %101, %v22
  %v103 = vpop.permute.xlu0 %102
  %106 = vset.pattern.permute.xlu0 0
  %107 = vperm.xlu0 %106, %v23
  %v108 = vpop.permute.xlu0 %107
  %111 = vset.pattern.permute.xlu0 0
  %112 = vperm.xlu0 %111, %v24
  %v113 = vpop.permute.xlu0 %112
  %116 = vset.pattern.permute.xlu0 0
  %117 = vperm.xlu0 %116, %v25
  %v118 = vpop.permute.xlu0 %117
  %121 = vset.pattern.permute.xlu0 0
  %122 = vperm.xlu0 %121, %v26
  %v123 = vpop.permute.xlu0 %122
  %126 = vset.pattern.permute.xlu0 0
  %127 = vperm.xlu0 %126, %v27
  %v128 = vpop.permute.xlu0 %127
  %131 = vset.pattern.permute.xlu0 0
  %132 = vperm.xlu0 %131, %v28
  %v133 = vpop.permute.xlu0 %132
  %136 = vset.pattern.permute.xlu0 0
  %137 = vperm.xlu0 %136, %v29
  %v138 = vpop.permute.xlu0 %137
  %141 = vset.pattern.permute.xlu0 0
  %142 = vperm.xlu0 %141, %v30
  %v143 = vpop.permute.xlu0 %142
  %146 = vset.pattern.permute.xlu0 0
  %147 = vperm.xlu0 %146, %v31
  %v148 = vpop.permute.xlu0 %147
  %151 = vset.pattern.permute.xlu0 0
  %152 = vperm.xlu0 %151, %v32
  %v153 = vpop.permute.xlu0 %152
  %156 = vset.pattern.permute.xlu0 0
  %157 = vperm.xlu0 %156, %v33
  %v158 = vpop.permute.xlu0 %157
  %161 = vset.pattern.permute.xlu0 0
  %162 = vperm.xlu0 %161, %v34
  %v163 = vpop.permute.xlu0 %162
  %166 = vset.pattern.permute.xlu0 0
  %167 = vperm.xlu0 %166, %v35
  %v168 = vpop.permute.xlu0 %167
  %171 = vset.pattern.permute.xlu0 0
  %172 = vperm.xlu0 %171, %v36
  %v173 = vpop.permute.xlu0 %172
  %176 = vset.pattern.permute.xlu0 0
  %177 = vperm.xlu0 %176, %v37
  %v178 = vpop.permute.xlu0 %177
  %181 = vset.pattern.permute.xlu0 0
  %182 = vperm.xlu0 %181, %v38
  %v183 = vpop.permute.xlu0 %182
  %186 = vset.pattern.permute.xlu0 0
  %187 = vperm.xlu0 %186, %v39
  %v188 = vpop.permute.xlu0 %187
  %191 = vset.pattern.permute.xlu0 0
  %192 = vperm.xlu0 %191, %v40
  %v193 = vpop.permute.xlu0 %192
  %196 = vset.pattern.permute.xlu0 0
  %197 = vperm.xlu0 %196, %v41
  %v198 = vpop.permute.xlu0 %197
  %201 = vset.pattern.permute.xlu0 0
  %202 = vperm.xlu0 %201, %v42
  %v203 = vpop.permute.xlu0 %202
  %v205 = vlaneseq
  %v206 = vshrl.u32 %v205, 7
  %v207 = vsub.s32 0, %v206
  %v208 = vrot.slane %v44, %v207
  %v209 = vmul.f32 %v48, %v208
  %v210 = vmul.f32 %v53, %v208
  %v211 = vmul.f32 %v58, %v208
  %v212 = vmul.f32 %v63, %v208
  %v213 = vmul.f32 %v68, %v208
  %v214 = vmul.f32 %v73, %v208
  %v215 = vmul.f32 %v78, %v208
  %v216 = vmul.f32 %v83, %v208
  %v217 = vmul.f32 %v88, %v208
  %v218 = vmul.f32 %v93, %v208
  %v219 = vmul.f32 %v98, %v208
  %v220 = vmul.f32 %v103, %v208
  %v221 = vmul.f32 %v108, %v208
  %v222 = vmul.f32 %v113, %v208
  %v223 = vmul.f32 %v118, %v208
  %v224 = vmul.f32 %v123, %v208
  %v225 = vmul.f32 %v128, %v208
  %v226 = vmul.f32 %v133, %v208
  %v227 = vmul.f32 %v138, %v208
  %v228 = vmul.f32 %v143, %v208
  %v229 = vmul.f32 %v148, %v208
  %v230 = vmul.f32 %v153, %v208
  %v231 = vmul.f32 %v158, %v208
  %v232 = vmul.f32 %v163, %v208
  %v233 = vmul.f32 %v168, %v208
  %v234 = vmul.f32 %v173, %v208
  %v235 = vmul.f32 %v178, %v208
  %v236 = vmul.f32 %v183, %v208
  %v237 = vmul.f32 %v188, %v208
  %v238 = vmul.f32 %v193, %v208
  %v239 = vmul.f32 %v198, %v208
  %v240 = vmul.f32 %v203, %v208
  %v241 = vlaneseq
  %v242 = vshrl.u32 %v241, 7
  %v243 = vsub.s32 0, %v242
  %v244 = vrot.slane %v43, %v243
  %v245 = vadd.f32 %v244, %v209
  %v246 = vadd.f32 %v244, %v210
  %v247 = vadd.f32 %v244, %v211
  %v248 = vadd.f32 %v244, %v212
  %v249 = vadd.f32 %v244, %v213
  %v250 = vadd.f32 %v244, %v214
  %v251 = vadd.f32 %v244, %v215
  %v252 = vadd.f32 %v244, %v216
  %v253 = vadd.f32 %v244, %v217
  %v254 = vadd.f32 %v244, %v218
  %v255 = vadd.f32 %v244, %v219
  %v256 = vadd.f32 %v244, %v220
  %v257 = vadd.f32 %v244, %v221
  %v258 = vadd.f32 %v244, %v222
  %v259 = vadd.f32 %v244, %v223
  %v260 = vadd.f32 %v244, %v224
  %v261 = vadd.f32 %v244, %v225
  %v262 = vadd.f32 %v244, %v226
  %v263 = vadd.f32 %v244, %v227
  %v264 = vadd.f32 %v244, %v228
  %v265 = vadd.f32 %v244, %v229
  %v266 = vadd.f32 %v244, %v230
  %v267 = vadd.f32 %v244, %v231
  %v268 = vadd.f32 %v244, %v232
  %v269 = vadd.f32 %v244, %v233
  %v270 = vadd.f32 %v244, %v234
  %v271 = vadd.f32 %v244, %v235
  %v272 = vadd.f32 %v244, %v236
  %v273 = vadd.f32 %v244, %v237
  %v274 = vadd.f32 %v244, %v238
  %v275 = vadd.f32 %v244, %v239
  %v276 = vadd.f32 %v244, %v240
  %v277 = vld [vmem:[%s1 + $0x1] sm:$0x1]
  %278 = vset.pattern.permute.xlu0 1
  %279 = vperm.xlu0 %278, %v11
  %v280 = vpop.permute.xlu0 %279
  %282 = vset.pattern.permute.xlu0 1
  %283 = vperm.xlu0 %282, %v12
  %v284 = vpop.permute.xlu0 %283
  %286 = vset.pattern.permute.xlu0 1
  %287 = vperm.xlu0 %286, %v13
  %v288 = vpop.permute.xlu0 %287
  %290 = vset.pattern.permute.xlu0 1
  %291 = vperm.xlu0 %290, %v14
  %v292 = vpop.permute.xlu0 %291
  %294 = vset.pattern.permute.xlu0 1
  %295 = vperm.xlu0 %294, %v15
  %v296 = vpop.permute.xlu0 %295
  %298 = vset.pattern.permute.xlu0 1
  %299 = vperm.xlu0 %298, %v16
  %v300 = vpop.permute.xlu0 %299
  %302 = vset.pattern.permute.xlu0 1
  %303 = vperm.xlu0 %302, %v17
  %v304 = vpop.permute.xlu0 %303
  %306 = vset.pattern.permute.xlu0 1
  %307 = vperm.xlu0 %306, %v18
  %v308 = vpop.permute.xlu0 %307
  %310 = vset.pattern.permute.xlu0 1
  %311 = vperm.xlu0 %310, %v19
  %v312 = vpop.permute.xlu0 %311
  %314 = vset.pattern.permute.xlu0 1
  %315 = vperm.xlu0 %314, %v20
  %v316 = vpop.permute.xlu0 %315
  %318 = vset.pattern.permute.xlu0 1
  %319 = vperm.xlu0 %318, %v21
  %v320 = vpop.permute.xlu0 %319
  %322 = vset.pattern.permute.xlu0 1
  %323 = vperm.xlu0 %322, %v22
  %v324 = vpop.permute.xlu0 %323
  %326 = vset.pattern.permute.xlu0 1
  %327 = vperm.xlu0 %326, %v23
  %v328 = vpop.permute.xlu0 %327
  %330 = vset.pattern.permute.xlu0 1
  %331 = vperm.xlu0 %330, %v24
  %v332 = vpop.permute.xlu0 %331
  %334 = vset.pattern.permute.xlu0 1
  %335 = vperm.xlu0 %334, %v25
  %v336 = vpop.permute.xlu0 %335
  %338 = vset.pattern.permute.xlu0 1
  %339 = vperm.xlu0 %338, %v26
  %v340 = vpop.permute.xlu0 %339
  %342 = vset.pattern.permute.xlu0 1
  %343 = vperm.xlu0 %342, %v27
  %v344 = vpop.permute.xlu0 %343
  %346 = vset.pattern.permute.xlu0 1
  %347 = vperm.xlu0 %346, %v28
  %v348 = vpop.permute.xlu0 %347
  %350 = vset.pattern.permute.xlu0 1
  %351 = vperm.xlu0 %350, %v29
  %v352 = vpop.permute.xlu0 %351
  %354 = vset.pattern.permute.xlu0 1
  %355 = vperm.xlu0 %354, %v30
  %v356 = vpop.permute.xlu0 %355
  %358 = vset.pattern.permute.xlu0 1
  %359 = vperm.xlu0 %358, %v31
  %v360 = vpop.permute.xlu0 %359
  %362 = vset.pattern.permute.xlu0 1
  %363 = vperm.xlu0 %362, %v32
  %v364 = vpop.permute.xlu0 %363
  %366 = vset.pattern.permute.xlu0 1
  %367 = vperm.xlu0 %366, %v33
  %v368 = vpop.permute.xlu0 %367
  %370 = vset.pattern.permute.xlu0 1
  %371 = vperm.xlu0 %370, %v34
  %v372 = vpop.permute.xlu0 %371
  %374 = vset.pattern.permute.xlu0 1
  %375 = vperm.xlu0 %374, %v35
  %v376 = vpop.permute.xlu0 %375
  %378 = vset.pattern.permute.xlu0 1
  %379 = vperm.xlu0 %378, %v36
  %v380 = vpop.permute.xlu0 %379
  %382 = vset.pattern.permute.xlu0 1
  %383 = vperm.xlu0 %382, %v37
  %v384 = vpop.permute.xlu0 %383
  %386 = vset.pattern.permute.xlu0 1
  %387 = vperm.xlu0 %386, %v38
  %v388 = vpop.permute.xlu0 %387
  %390 = vset.pattern.permute.xlu0 1
  %391 = vperm.xlu0 %390, %v39
  %v392 = vpop.permute.xlu0 %391
  %394 = vset.pattern.permute.xlu0 1
  %395 = vperm.xlu0 %394, %v40
  %v396 = vpop.permute.xlu0 %395
  %398 = vset.pattern.permute.xlu0 1
  %399 = vperm.xlu0 %398, %v41
  %v400 = vpop.permute.xlu0 %399
  %402 = vset.pattern.permute.xlu0 1
  %403 = vperm.xlu0 %402, %v42
  %v404 = vpop.permute.xlu0 %403
  %v406 = vlaneseq
  %v407 = vshrl.u32 %v406, 7
  %v408 = vsub.s32 0, %v407
  %v409 = vrot.slane %v277, %v408
  %v410 = vmul.f32 %v280, %v409
  %v411 = vmul.f32 %v284, %v409
  %v412 = vmul.f32 %v288, %v409
  %v413 = vmul.f32 %v292, %v409
  %v414 = vmul.f32 %v296, %v409
  %v415 = vmul.f32 %v300, %v409
  %v416 = vmul.f32 %v304, %v409
  %v417 = vmul.f32 %v308, %v409
  %v418 = vmul.f32 %v312, %v409
  %v419 = vmul.f32 %v316, %v409
  %v420 = vmul.f32 %v320, %v409
  %v421 = vmul.f32 %v324, %v409
  %v422 = vmul.f32 %v328, %v409
  %v423 = vmul.f32 %v332, %v409
  %v424 = vmul.f32 %v336, %v409
  %v425 = vmul.f32 %v340, %v409
  %v426 = vmul.f32 %v344, %v409
  %v427 = vmul.f32 %v348, %v409
  %v428 = vmul.f32 %v352, %v409
  %v429 = vmul.f32 %v356, %v409
  %v430 = vmul.f32 %v360, %v409
  %v431 = vmul.f32 %v364, %v409
  %v432 = vmul.f32 %v368, %v409
  %v433 = vmul.f32 %v372, %v409
  %v434 = vmul.f32 %v376, %v409
  %v435 = vmul.f32 %v380, %v409
  %v436 = vmul.f32 %v384, %v409
  %v437 = vmul.f32 %v388, %v409
  %v438 = vmul.f32 %v392, %v409
  %v439 = vmul.f32 %v396, %v409
  %v440 = vmul.f32 %v400, %v409
  %v441 = vmul.f32 %v404, %v409
  %v442 = vadd.f32 %v245, %v410
  %v443 = vadd.f32 %v246, %v411
  %v444 = vadd.f32 %v247, %v412
  %v445 = vadd.f32 %v248, %v413
  %v446 = vadd.f32 %v249, %v414
  %v447 = vadd.f32 %v250, %v415
  %v448 = vadd.f32 %v251, %v416
  %v449 = vadd.f32 %v252, %v417
  %v450 = vadd.f32 %v253, %v418
  %v451 = vadd.f32 %v254, %v419
  %v452 = vadd.f32 %v255, %v420
  %v453 = vadd.f32 %v256, %v421
  %v454 = vadd.f32 %v257, %v422
  %v455 = vadd.f32 %v258, %v423
  %v456 = vadd.f32 %v259, %v424
  %v457 = vadd.f32 %v260, %v425
  %v458 = vadd.f32 %v261, %v426
  %v459 = vadd.f32 %v262, %v427
  %v460 = vadd.f32 %v263, %v428
  %v461 = vadd.f32 %v264, %v429
  %v462 = vadd.f32 %v265, %v430
  %v463 = vadd.f32 %v266, %v431
  %v464 = vadd.f32 %v267, %v432
  %v465 = vadd.f32 %v268, %v433
  %v466 = vadd.f32 %v269, %v434
  %v467 = vadd.f32 %v270, %v435
  %v468 = vadd.f32 %v271, %v436
  %v469 = vadd.f32 %v272, %v437
  %v470 = vadd.f32 %v273, %v438
  %v471 = vadd.f32 %v274, %v439
  %v472 = vadd.f32 %v275, %v440
  %v473 = vadd.f32 %v276, %v441
  %v474 = vtanh.pop %v442
  %v475 = vtanh.pop %v443
  %v476 = vtanh.pop %v444
  %v477 = vtanh.pop %v445
  %v478 = vtanh.pop %v446
  %v479 = vtanh.pop %v447
  %v480 = vtanh.pop %v448
  %v481 = vtanh.pop %v449
  %v482 = vtanh.pop %v450
  %v483 = vtanh.pop %v451
  %v484 = vtanh.pop %v452
  %v485 = vtanh.pop %v453
  %v486 = vtanh.pop %v454
  %v487 = vtanh.pop %v455
  %v488 = vtanh.pop %v456
  %v489 = vtanh.pop %v457
  %v490 = vtanh.pop %v458
  %v491 = vtanh.pop %v459
  %v492 = vtanh.pop %v460
  %v493 = vtanh.pop %v461
  %v494 = vtanh.pop %v462
  %v495 = vtanh.pop %v463
  %v496 = vtanh.pop %v464
  %v497 = vtanh.pop %v465
  %v498 = vtanh.pop %v466
  %v499 = vtanh.pop %v467
  %v500 = vtanh.pop %v468
  %v501 = vtanh.pop %v469
  %v502 = vtanh.pop %v470
  %v503 = vtanh.pop %v471
  %v504 = vtanh.pop %v472
  %v505 = vtanh.pop %v473
  %v506 = vld [vmem:[%s1 + $0x8] sm:$0xff]
  %v507 = vld [vmem:[%s1 + $0x10] sm:$0xff]
  %v508 = vld [vmem:[%s1 + $0x18] sm:$0xff]
  %v509 = vld [vmem:[%s1 + $0x20] sm:$0xff]
  %v510 = vld [vmem:[%s1 + $0x3] sm:$0x1]
  %v511 = vlaneseq
  %v512 = vshrl.u32 %v511, 7
  %v513 = vsub.s32 0, %v512
  %v514 = vrot.slane %v510, %v513
  %vm515 = vcmask 261120
  %v517 = vsel %vm515, %v474, 0
  %v520 = vsel %vm515, %v475, 0
  %v523 = vsel %vm515, %v476, 0
  %v526 = vsel %vm515, %v477, 0
  %v529 = vsel %vm515, %v478, 0
  %v532 = vsel %vm515, %v479, 0
  %v535 = vsel %vm515, %v480, 0
  %v538 = vsel %vm515, %v481, 0
  %v541 = vsel %vm515, %v482, 0
  %v544 = vsel %vm515, %v483, 0
  %v547 = vsel %vm515, %v484, 0
  %v550 = vsel %vm515, %v485, 0
  %v553 = vsel %vm515, %v486, 0
  %v556 = vsel %vm515, %v487, 0
  %v559 = vsel %vm515, %v488, 0
  %v562 = vsel %vm515, %v489, 0
  %v565 = vsel %vm515, %v490, 0
  %v568 = vsel %vm515, %v491, 0
  %v571 = vsel %vm515, %v492, 0
  %v574 = vsel %vm515, %v493, 0
  %v577 = vsel %vm515, %v494, 0
  %v580 = vsel %vm515, %v495, 0
  %v583 = vsel %vm515, %v496, 0
  %v586 = vsel %vm515, %v497, 0
  %v589 = vsel %vm515, %v498, 0
  %v592 = vsel %vm515, %v499, 0
  %v595 = vsel %vm515, %v500, 0
  %v598 = vsel %vm515, %v501, 0
  %v601 = vsel %vm515, %v502, 0
  %v604 = vsel %vm515, %v503, 0
  %v607 = vsel %vm515, %v504, 0
  %v610 = vsel %vm515, %v505, 0
  %v613 = vsel %vm515, %v506, 0
  %v616 = vsel %vm515, %v507, 0
  %v619 = vsel %vm515, %v508, 0
  %v622 = vsel %vm515, %v509, 0
  %624 = vmatprep.subr.mxu0 0.0
  %625 = vmatpush1.xpose.msra.mxu0 %v613
  %626 = vmatprep.subr.mxu0 0.0
  %627 = vmatpush1.xpose.msra.mxu0 %v616
  %628 = vmatprep.subr.mxu0 0.0
  %629 = vmatpush1.xpose.msra.mxu0 %v619
  %630 = vmatprep.subr.mxu0 0.0
  %631 = vmatpush1.xpose.msra.mxu0 %v622
  %632 = vmatprep.subr.mxu0 0.0
  %633 = vmatpush1.xpose.msra.mxu0 0.0
  %634 = vmatprep.subr.mxu0 0.0
  %635 = vmatpush1.xpose.msra.mxu0 0.0
  %636 = vmatprep.subr.mxu0 0.0
  %637 = vmatpush1.xpose.msra.mxu0 0.0
  %638 = vmatprep.subr.mxu0 0.0
  %639 = vmatpush1.xpose.msra.mxu0 0.0
  %640 = vmatprep.subr.mxu0 0.0
  %641 = vmatpush1.xpose.msra.mxu0 0.0
  %642 = vmatprep.subr.mxu0 0.0
  %643 = vmatpush1.xpose.msra.mxu0 0.0
  %644 = vmatprep.subr.mxu0 0.0
  %645 = vmatpush1.xpose.msra.mxu0 0.0
  %646 = vmatprep.subr.mxu0 0.0
  %647 = vmatpush1.xpose.msra.mxu0 0.0
  %648 = vmatprep.subr.mxu0 0.0
  %649 = vmatpush1.xpose.msra.mxu0 0.0
  %650 = vmatprep.subr.mxu0 0.0
  %651 = vmatpush1.xpose.msra.mxu0 0.0
  %652 = vmatprep.subr.mxu0 0.0
  %653 = vmatpush1.xpose.msra.mxu0 0.0
  %654 = vmatprep.subr.mxu0 0.0
  %655 = vmatpush1.xpose.msra.mxu0 0.0
  %656 = vmatprep.subr.mxu0 0.0
  %657 = vmatpush1.xpose.msra.mxu0 0.0
  %658 = vmatprep.subr.mxu0 0.0
  %659 = vmatpush1.xpose.msra.mxu0 0.0
  %660 = vmatprep.subr.mxu0 0.0
  %661 = vmatpush1.xpose.msra.mxu0 0.0
  %662 = vmatprep.subr.mxu0 0.0
  %663 = vmatpush1.xpose.msra.mxu0 0.0
  %664 = vmatprep.subr.mxu0 0.0
  %665 = vmatpush1.xpose.msra.mxu0 0.0
  %666 = vmatprep.subr.mxu0 0.0
  %667 = vmatpush1.xpose.msra.mxu0 0.0
  %668 = vmatprep.subr.mxu0 0.0
  %669 = vmatpush1.xpose.msra.mxu0 0.0
  %670 = vmatprep.subr.mxu0 0.0
  %671 = vmatpush1.xpose.msra.mxu0 0.0
  %672 = vmatprep.subr.mxu0 0.0
  %673 = vmatpush1.xpose.msra.mxu0 0.0
  %674 = vmatprep.subr.mxu0 0.0
  %675 = vmatpush1.xpose.msra.mxu0 0.0
  %676 = vmatprep.subr.mxu0 0.0
  %677 = vmatpush1.xpose.msra.mxu0 0.0
  %678 = vmatprep.subr.mxu0 0.0
  %679 = vmatpush1.xpose.msra.mxu0 0.0
  %680 = vmatprep.subr.mxu0 0.0
  %681 = vmatpush1.xpose.msra.mxu0 0.0
  %682 = vmatprep.subr.mxu0 0.0
  %683 = vmatpush1.xpose.msra.mxu0 0.0
  %684 = vmatprep.subr.mxu0 0.0
  %685 = vmatpush1.xpose.msra.mxu0 0.0
  %686 = vmatprep.subr.mxu0 0.0
  %687 = vmatpush1.xpose.msra.mxu0 0.0
  %688 = vmatprep.mubr.f32.mxu0 0.0
  %689 = vmatmul.mubr.f32.gmra.mrb[0].mxu0 %v517
  %v690 = vpop.f32.mrb[0].mxu0
  %v691 = vadd.f32 %v514, %v690
  %v692 = vpop.f32.mrb[0].mxu0
  %693 = vmatprep.mubr.f32.mxu0 0.0
  %694 = vmatmul.mubr.f32.gmra.mrb[0].mxu0 %v520
  %v695 = vpop.f32.mrb[0].mxu0
  %v696 = vadd.f32 %v514, %v695
  %v697 = vpop.f32.mrb[0].mxu0
  %698 = vmatprep.mubr.f32.mxu0 0.0
  %699 = vmatmul.mubr.f32.gmra.mrb[0].mxu0 %v523
  %v700 = vpop.f32.mrb[0].mxu0
  %v701 = vadd.f32 %v514, %v700
  %v702 = vpop.f32.mrb[0].mxu0
  %703 = vmatprep.mubr.f32.mxu0 0.0
  %704 = vmatmul.mubr.f32.gmra.mrb[0].mxu0 %v526
  %v705 = vpop.f32.mrb[0].mxu0
  %v706 = vadd.f32 %v514, %v705
  %v707 = vpop.f32.mrb[0].mxu0
  %708 = vmatprep.mubr.f32.mxu0 0.0
  %709 = vmatmul.mubr.f32.gmra.mrb[0].mxu0 %v529
  %v710 = vpop.f32.mrb[0].mxu0
  %v711 = vadd.f32 %v514, %v710
  %v712 = vpop.f32.mrb[0].mxu0
  %713 = vmatprep.mubr.f32.mxu0 0.0
  %714 = vmatmul.mubr.f32.gmra.mrb[0].mxu0 %v532
  %v715 = vpop.f32.mrb[0].mxu0
  %v716 = vadd.f32 %v514, %v715
  %v717 = vpop.f32.mrb[0].mxu0
  %718 = vmatprep.mubr.f32.mxu0 0.0
  %719 = vmatmul.mubr.f32.gmra.mrb[0].mxu0 %v535
  %v720 = vpop.f32.mrb[0].mxu0
  %v721 = vadd.f32 %v514, %v720
  %v722 = vpop.f32.mrb[0].mxu0
  %723 = vmatprep.mubr.f32.mxu0 0.0
  %724 = vmatmul.mubr.f32.gmra.mrb[0].mxu0 %v538
  %v725 = vpop.f32.mrb[0].mxu0
  %v726 = vadd.f32 %v514, %v725
  %v727 = vpop.f32.mrb[0].mxu0
  %728 = vmatprep.mubr.f32.mxu0 0.0
  %729 = vmatmul.mubr.f32.gmra.mrb[0].mxu0 %v541
  %v730 = vpop.f32.mrb[0].mxu0
  %v731 = vadd.f32 %v514, %v730
  %v732 = vpop.f32.mrb[0].mxu0
  %733 = vmatprep.mubr.f32.mxu0 0.0
  %734 = vmatmul.mubr.f32.gmra.mrb[0].mxu0 %v544
  %v735 = vpop.f32.mrb[0].mxu0
  %v736 = vadd.f32 %v514, %v735
  %v737 = vpop.f32.mrb[0].mxu0
  %738 = vmatprep.mubr.f32.mxu0 0.0
  %739 = vmatmul.mubr.f32.gmra.mrb[0].mxu0 %v547
  %v740 = vpop.f32.mrb[0].mxu0
  %v741 = vadd.f32 %v514, %v740
  %v742 = vpop.f32.mrb[0].mxu0
  %743 = vmatprep.mubr.f32.mxu0 0.0
  %744 = vmatmul.mubr.f32.gmra.mrb[0].mxu0 %v550
  %v745 = vpop.f32.mrb[0].mxu0
  %v746 = vadd.f32 %v514, %v745
  %v747 = vpop.f32.mrb[0].mxu0
  %748 = vmatprep.mubr.f32.mxu0 0.0
  %749 = vmatmul.mubr.f32.gmra.mrb[0].mxu0 %v553
  %v750 = vpop.f32.mrb[0].mxu0
  %v751 = vadd.f32 %v514, %v750
  %v752 = vpop.f32.mrb[0].mxu0
  %753 = vmatprep.mubr.f32.mxu0 0.0
  %754 = vmatmul.mubr.f32.gmra.mrb[0].mxu0 %v556
  %v755 = vpop.f32.mrb[0].mxu0
  %v756 = vadd.f32 %v514, %v755
  %v757 = vpop.f32.mrb[0].mxu0
  %758 = vmatprep.mubr.f32.mxu0 0.0
  %759 = vmatmul.mubr.f32.gmra.mrb[0].mxu0 %v559
  %v760 = vpop.f32.mrb[0].mxu0
  %v761 = vadd.f32 %v514, %v760
  %v762 = vpop.f32.mrb[0].mxu0
  %763 = vmatprep.mubr.f32.mxu0 0.0
  %764 = vmatmul.mubr.f32.gmra.mrb[0].mxu0 %v562
  %v765 = vpop.f32.mrb[0].mxu0
  %v766 = vadd.f32 %v514, %v765
  %v767 = vpop.f32.mrb[0].mxu0
  %768 = vmatprep.mubr.f32.mxu0 0.0
  %769 = vmatmul.mubr.f32.gmra.mrb[0].mxu0 %v565
  %v770 = vpop.f32.mrb[0].mxu0
  %v771 = vadd.f32 %v514, %v770
  %v772 = vpop.f32.mrb[0].mxu0
  %773 = vmatprep.mubr.f32.mxu0 0.0
  %774 = vmatmul.mubr.f32.gmra.mrb[0].mxu0 %v568
  %v775 = vpop.f32.mrb[0].mxu0
  %v776 = vadd.f32 %v514, %v775
  %v777 = vpop.f32.mrb[0].mxu0
  %778 = vmatprep.mubr.f32.mxu0 0.0
  %779 = vmatmul.mubr.f32.gmra.mrb[0].mxu0 %v571
  %v780 = vpop.f32.mrb[0].mxu0
  %v781 = vadd.f32 %v514, %v780
  %v782 = vpop.f32.mrb[0].mxu0
  %783 = vmatprep.mubr.f32.mxu0 0.0
  %784 = vmatmul.mubr.f32.gmra.mrb[0].mxu0 %v574
  %v785 = vpop.f32.mrb[0].mxu0
  %v786 = vadd.f32 %v514, %v785
  %v787 = vpop.f32.mrb[0].mxu0
  %788 = vmatprep.mubr.f32.mxu0 0.0
  %789 = vmatmul.mubr.f32.gmra.mrb[0].mxu0 %v577
  %v790 = vpop.f32.mrb[0].mxu0
  %v791 = vadd.f32 %v514, %v790
  %v792 = vpop.f32.mrb[0].mxu0
  %793 = vmatprep.mubr.f32.mxu0 0.0
  %794 = vmatmul.mubr.f32.gmra.mrb[0].mxu0 %v580
  %v795 = vpop.f32.mrb[0].mxu0
  %v796 = vadd.f32 %v514, %v795
  %v797 = vpop.f32.mrb[0].mxu0
  %798 = vmatprep.mubr.f32.mxu0 0.0
  %799 = vmatmul.mubr.f32.gmra.mrb[0].mxu0 %v583
  %v800 = vpop.f32.mrb[0].mxu0
  %v801 = vadd.f32 %v514, %v800
  %v802 = vpop.f32.mrb[0].mxu0
  %803 = vmatprep.mubr.f32.mxu0 0.0
  %804 = vmatmul.mubr.f32.gmra.mrb[0].mxu0 %v586
  %v805 = vpop.f32.mrb[0].mxu0
  %v806 = vadd.f32 %v514, %v805
  %v807 = vpop.f32.mrb[0].mxu0
  %808 = vmatprep.mubr.f32.mxu0 0.0
  %809 = vmatmul.mubr.f32.gmra.mrb[0].mxu0 %v589
  %v810 = vpop.f32.mrb[0].mxu0
  %v811 = vadd.f32 %v514, %v810
  %v812 = vpop.f32.mrb[0].mxu0
  %813 = vmatprep.mubr.f32.mxu0 0.0
  %814 = vmatmul.mubr.f32.gmra.mrb[0].mxu0 %v592
  %v815 = vpop.f32.mrb[0].mxu0
  %v816 = vadd.f32 %v514, %v815
  %v817 = vpop.f32.mrb[0].mxu0
  %818 = vmatprep.mubr.f32.mxu0 0.0
  %819 = vmatmul.mubr.f32.gmra.mrb[0].mxu0 %v595
  %v820 = vpop.f32.mrb[0].mxu0
  %v821 = vadd.f32 %v514, %v820
  %v822 = vpop.f32.mrb[0].mxu0
  %823 = vmatprep.mubr.f32.mxu0 0.0
  %824 = vmatmul.mubr.f32.gmra.mrb[0].mxu0 %v598
  %v825 = vpop.f32.mrb[0].mxu0
  %v826 = vadd.f32 %v514, %v825
  %v827 = vpop.f32.mrb[0].mxu0
  %828 = vmatprep.mubr.f32.mxu0 0.0
  %829 = vmatmul.mubr.f32.gmra.mrb[0].mxu0 %v601
  %v830 = vpop.f32.mrb[0].mxu0
  %v831 = vadd.f32 %v514, %v830
  %v832 = vpop.f32.mrb[0].mxu0
  %833 = vmatprep.mubr.f32.mxu0 0.0
  %834 = vmatmul.mubr.f32.gmra.mrb[0].mxu0 %v604
  %v835 = vpop.f32.mrb[0].mxu0
  %v836 = vadd.f32 %v514, %v835
  %v837 = vpop.f32.mrb[0].mxu0
  %838 = vmatprep.mubr.f32.mxu0 0.0
  %839 = vmatmul.mubr.f32.gmra.mrb[0].mxu0 %v607
  %v840 = vpop.f32.mrb[0].mxu0
  %v841 = vadd.f32 %v514, %v840
  %v842 = vpop.f32.mrb[0].mxu0
  %843 = vmatprep.mubr.f32.mxu0 0.0
  %844 = vmatmul.mubr.f32.gmra.mrb[0].mxu0 %v610
  %v845 = vpop.f32.mrb[0].mxu0
  %v846 = vadd.f32 %v514, %v845
  %v847 = vpop.f32.mrb[0].mxu0
  %848 = vdwg.mxu0
  %v849 = vtanh.pop %v691
  %v850 = vtanh.pop %v696
  %v851 = vtanh.pop %v701
  %v852 = vtanh.pop %v706
  %v853 = vtanh.pop %v711
  %v854 = vtanh.pop %v716
  %v855 = vtanh.pop %v721
  %v856 = vtanh.pop %v726
  %v857 = vtanh.pop %v731
  %v858 = vtanh.pop %v736
  %v859 = vtanh.pop %v741
  %v860 = vtanh.pop %v746
  %v861 = vtanh.pop %v751
  %v862 = vtanh.pop %v756
  %v863 = vtanh.pop %v761
  %v864 = vtanh.pop %v766
  %v865 = vtanh.pop %v771
  %v866 = vtanh.pop %v776
  %v867 = vtanh.pop %v781
  %v868 = vtanh.pop %v786
  %v869 = vtanh.pop %v791
  %v870 = vtanh.pop %v796
  %v871 = vtanh.pop %v801
  %v872 = vtanh.pop %v806
  %v873 = vtanh.pop %v811
  %v874 = vtanh.pop %v816
  %v875 = vtanh.pop %v821
  %v876 = vtanh.pop %v826
  %v877 = vtanh.pop %v831
  %v878 = vtanh.pop %v836
  %v879 = vtanh.pop %v841
  %v880 = vtanh.pop %v846
  %v881 = vld [vmem:[%s1 + $0x28] sm:$0xff]
  %v882 = vld [vmem:[%s1 + $0x30] sm:$0xff]
  %v883 = vld [vmem:[%s1 + $0x38] sm:$0xff]
  %v884 = vld [vmem:[%s1 + $0x40] sm:$0xff]
  %v885 = vld [vmem:[%s1 + $0x4] sm:$0x1]
  %v886 = vlaneseq
  %v887 = vshrl.u32 %v886, 7
  %v888 = vsub.s32 0, %v887
  %v889 = vrot.slane %v885, %v888
  %v891 = vsel %vm515, %v849, 0
  %v894 = vsel %vm515, %v850, 0
  %v897 = vsel %vm515, %v851, 0
  %v900 = vsel %vm515, %v852, 0
  %v903 = vsel %vm515, %v853, 0
  %v906 = vsel %vm515, %v854, 0
  %v909 = vsel %vm515, %v855, 0
  %v912 = vsel %vm515, %v856, 0
  %v915 = vsel %vm515, %v857, 0
  %v918 = vsel %vm515, %v858, 0
  %v921 = vsel %vm515, %v859, 0
  %v924 = vsel %vm515, %v860, 0
  %v927 = vsel %vm515, %v861, 0
  %v930 = vsel %vm515, %v862, 0
  %v933 = vsel %vm515, %v863, 0
  %v936 = vsel %vm515, %v864, 0
  %v939 = vsel %vm515, %v865, 0
  %v942 = vsel %vm515, %v866, 0
  %v945 = vsel %vm515, %v867, 0
  %v948 = vsel %vm515, %v868, 0
  %v951 = vsel %vm515, %v869, 0
  %v954 = vsel %vm515, %v870, 0
  %v957 = vsel %vm515, %v871, 0
  %v960 = vsel %vm515, %v872, 0
  %v963 = vsel %vm515, %v873, 0
  %v966 = vsel %vm515, %v874, 0
  %v969 = vsel %vm515, %v875, 0
  %v972 = vsel %vm515, %v876, 0
  %v975 = vsel %vm515, %v877, 0
  %v978 = vsel %vm515, %v878, 0
  %v981 = vsel %vm515, %v879, 0
  %v984 = vsel %vm515, %v880, 0
  %v987 = vsel %vm515, %v881, 0
  %v990 = vsel %vm515, %v882, 0
  %v993 = vsel %vm515, %v883, 0
  %v996 = vsel %vm515, %v884, 0
  %998 = vmatprep.subr.mxu0 0.0
  %999 = vmatpush1.xpose.msra.mxu0 %v987
  %1000 = vmatprep.subr.mxu0 0.0
  %1001 = vmatpush1.xpose.msra.mxu0 %v990
  %1002 = vmatprep.subr.mxu0 0.0
  %1003 = vmatpush1.xpose.msra.mxu0 %v993
  %1004 = vmatprep.subr.mxu0 0.0
  %1005 = vmatpush1.xpose.msra.mxu0 %v996
  %1006 = vmatprep.subr.mxu0 0.0
  %1007 = vmatpush1.xpose.msra.mxu0 0.0
  %1008 = vmatprep.subr.mxu0 0.0
  %1009 = vmatpush1.xpose.msra.mxu0 0.0
  %1010 = vmatprep.subr.mxu0 0.0
  %1011 = vmatpush1.xpose.msra.mxu0 0.0
  %1012 = vmatprep.subr.mxu0 0.0
  %1013 = vmatpush1.xpose.msra.mxu0 0.0
  %1014 = vmatprep.subr.mxu0 0.0
  %1015 = vmatpush1.xpose.msra.mxu0 0.0
  %1016 = vmatprep.subr.mxu0 0.0
  %1017 = vmatpush1.xpose.msra.mxu0 0.0
  %1018 = vmatprep.subr.mxu0 0.0
  %1019 = vmatpush1.xpose.msra.mxu0 0.0
  %1020 = vmatprep.subr.mxu0 0.0
  %1021 = vmatpush1.xpose.msra.mxu0 0.0
  %1022 = vmatprep.subr.mxu0 0.0
  %1023 = vmatpush1.xpose.msra.mxu0 0.0
  %1024 = vmatprep.subr.mxu0 0.0
  %1025 = vmatpush1.xpose.msra.mxu0 0.0
  %1026 = vmatprep.subr.mxu0 0.0
  %1027 = vmatpush1.xpose.msra.mxu0 0.0
  %1028 = vmatprep.subr.mxu0 0.0
  %1029 = vmatpush1.xpose.msra.mxu0 0.0
  %1030 = vmatprep.subr.mxu0 0.0
  %1031 = vmatpush1.xpose.msra.mxu0 0.0
  %1032 = vmatprep.subr.mxu0 0.0
  %1033 = vmatpush1.xpose.msra.mxu0 0.0
  %1034 = vmatprep.subr.mxu0 0.0
  %1035 = vmatpush1.xpose.msra.mxu0 0.0
  %1036 = vmatprep.subr.mxu0 0.0
  %1037 = vmatpush1.xpose.msra.mxu0 0.0
  %1038 = vmatprep.subr.mxu0 0.0
  %1039 = vmatpush1.xpose.msra.mxu0 0.0
  %1040 = vmatprep.subr.mxu0 0.0
  %1041 = vmatpush1.xpose.msra.mxu0 0.0
  %1042 = vmatprep.subr.mxu0 0.0
  %1043 = vmatpush1.xpose.msra.mxu0 0.0
  %1044 = vmatprep.subr.mxu0 0.0
  %1045 = vmatpush1.xpose.msra.mxu0 0.0
  %1046 = vmatprep.subr.mxu0 0.0
  %1047 = vmatpush1.xpose.msra.mxu0 0.0
  %1048 = vmatprep.subr.mxu0 0.0
  %1049 = vmatpush1.xpose.msra.mxu0 0.0
  %1050 = vmatprep.subr.mxu0 0.0
  %1051 = vmatpush1.xpose.msra.mxu0 0.0
  %1052 = vmatprep.subr.mxu0 0.0
  %1053 = vmatpush1.xpose.msra.mxu0 0.0
  %1054 = vmatprep.subr.mxu0 0.0
  %1055 = vmatpush1.xpose.msra.mxu0 0.0
  %1056 = vmatprep.subr.mxu0 0.0
  %1057 = vmatpush1.xpose.msra.mxu0 0.0
  %1058 = vmatprep.subr.mxu0 0.0
  %1059 = vmatpush1.xpose.msra.mxu0 0.0
  %1060 = vmatprep.subr.mxu0 0.0
  %1061 = vmatpush1.xpose.msra.mxu0 0.0
  %1062 = vmatprep.mubr.f32.mxu0 0.0
  %1063 = vmatmul.mubr.f32.gmra.mrb[0].mxu0 %v891
  %v1064 = vpop.f32.mrb[0].mxu0
  %v1065 = vadd.f32 %v889, %v1064
  %v1066 = vpop.f32.mrb[0].mxu0
  %1067 = vmatprep.mubr.f32.mxu0 0.0
  %1068 = vmatmul.mubr.f32.gmra.mrb[0].mxu0 %v894
  %v1069 = vpop.f32.mrb[0].mxu0
  %v1070 = vadd.f32 %v889, %v1069
  %v1071 = vpop.f32.mrb[0].mxu0
  %1072 = vmatprep.mubr.f32.mxu0 0.0
  %1073 = vmatmul.mubr.f32.gmra.mrb[0].mxu0 %v897
  %v1074 = vpop.f32.mrb[0].mxu0
  %v1075 = vadd.f32 %v889, %v1074
  %v1076 = vpop.f32.mrb[0].mxu0
  %1077 = vmatprep.mubr.f32.mxu0 0.0
  %1078 = vmatmul.mubr.f32.gmra.mrb[0].mxu0 %v900
  %v1079 = vpop.f32.mrb[0].mxu0
  %v1080 = vadd.f32 %v889, %v1079
  %v1081 = vpop.f32.mrb[0].mxu0
  %1082 = vmatprep.mubr.f32.mxu0 0.0
  %1083 = vmatmul.mubr.f32.gmra.mrb[0].mxu0 %v903
  %v1084 = vpop.f32.mrb[0].mxu0
  %v1085 = vadd.f32 %v889, %v1084
  %v1086 = vpop.f32.mrb[0].mxu0
  %1087 = vmatprep.mubr.f32.mxu0 0.0
  %1088 = vmatmul.mubr.f32.gmra.mrb[0].mxu0 %v906
  %v1089 = vpop.f32.mrb[0].mxu0
  %v1090 = vadd.f32 %v889, %v1089
  %v1091 = vpop.f32.mrb[0].mxu0
  %1092 = vmatprep.mubr.f32.mxu0 0.0
  %1093 = vmatmul.mubr.f32.gmra.mrb[0].mxu0 %v909
  %v1094 = vpop.f32.mrb[0].mxu0
  %v1095 = vadd.f32 %v889, %v1094
  %v1096 = vpop.f32.mrb[0].mxu0
  %1097 = vmatprep.mubr.f32.mxu0 0.0
  %1098 = vmatmul.mubr.f32.gmra.mrb[0].mxu0 %v912
  %v1099 = vpop.f32.mrb[0].mxu0
  %v1100 = vadd.f32 %v889, %v1099
  %v1101 = vpop.f32.mrb[0].mxu0
  %1102 = vmatprep.mubr.f32.mxu0 0.0
  %1103 = vmatmul.mubr.f32.gmra.mrb[0].mxu0 %v915
  %v1104 = vpop.f32.mrb[0].mxu0
  %v1105 = vadd.f32 %v889, %v1104
  %v1106 = vpop.f32.mrb[0].mxu0
  %1107 = vmatprep.mubr.f32.mxu0 0.0
  %1108 = vmatmul.mubr.f32.gmra.mrb[0].mxu0 %v918
  %v1109 = vpop.f32.mrb[0].mxu0
  %v1110 = vadd.f32 %v889, %v1109
  %v1111 = vpop.f32.mrb[0].mxu0
  %1112 = vmatprep.mubr.f32.mxu0 0.0
  %1113 = vmatmul.mubr.f32.gmra.mrb[0].mxu0 %v921
  %v1114 = vpop.f32.mrb[0].mxu0
  %v1115 = vadd.f32 %v889, %v1114
  %v1116 = vpop.f32.mrb[0].mxu0
  %1117 = vmatprep.mubr.f32.mxu0 0.0
  %1118 = vmatmul.mubr.f32.gmra.mrb[0].mxu0 %v924
  %v1119 = vpop.f32.mrb[0].mxu0
  %v1120 = vadd.f32 %v889, %v1119
  %v1121 = vpop.f32.mrb[0].mxu0
  %1122 = vmatprep.mubr.f32.mxu0 0.0
  %1123 = vmatmul.mubr.f32.gmra.mrb[0].mxu0 %v927
  %v1124 = vpop.f32.mrb[0].mxu0
  %v1125 = vadd.f32 %v889, %v1124
  %v1126 = vpop.f32.mrb[0].mxu0
  %1127 = vmatprep.mubr.f32.mxu0 0.0
  %1128 = vmatmul.mubr.f32.gmra.mrb[0].mxu0 %v930
  %v1129 = vpop.f32.mrb[0].mxu0
  %v1130 = vadd.f32 %v889, %v1129
  %v1131 = vpop.f32.mrb[0].mxu0
  %1132 = vmatprep.mubr.f32.mxu0 0.0
  %1133 = vmatmul.mubr.f32.gmra.mrb[0].mxu0 %v933
  %v1134 = vpop.f32.mrb[0].mxu0
  %v1135 = vadd.f32 %v889, %v1134
  %v1136 = vpop.f32.mrb[0].mxu0
  %1137 = vmatprep.mubr.f32.mxu0 0.0
  %1138 = vmatmul.mubr.f32.gmra.mrb[0].mxu0 %v936
  %v1139 = vpop.f32.mrb[0].mxu0
  %v1140 = vadd.f32 %v889, %v1139
  %v1141 = vpop.f32.mrb[0].mxu0
  %1142 = vmatprep.mubr.f32.mxu0 0.0
  %1143 = vmatmul.mubr.f32.gmra.mrb[0].mxu0 %v939
  %v1144 = vpop.f32.mrb[0].mxu0
  %v1145 = vadd.f32 %v889, %v1144
  %v1146 = vpop.f32.mrb[0].mxu0
  %1147 = vmatprep.mubr.f32.mxu0 0.0
  %1148 = vmatmul.mubr.f32.gmra.mrb[0].mxu0 %v942
  %v1149 = vpop.f32.mrb[0].mxu0
  %v1150 = vadd.f32 %v889, %v1149
  %v1151 = vpop.f32.mrb[0].mxu0
  %1152 = vmatprep.mubr.f32.mxu0 0.0
  %1153 = vmatmul.mubr.f32.gmra.mrb[0].mxu0 %v945
  %v1154 = vpop.f32.mrb[0].mxu0
  %v1155 = vadd.f32 %v889, %v1154
  %v1156 = vpop.f32.mrb[0].mxu0
  %1157 = vmatprep.mubr.f32.mxu0 0.0
  %1158 = vmatmul.mubr.f32.gmra.mrb[0].mxu0 %v948
  %v1159 = vpop.f32.mrb[0].mxu0
  %v1160 = vadd.f32 %v889, %v1159
  %v1161 = vpop.f32.mrb[0].mxu0
  %1162 = vmatprep.mubr.f32.mxu0 0.0
  %1163 = vmatmul.mubr.f32.gmra.mrb[0].mxu0 %v951
  %v1164 = vpop.f32.mrb[0].mxu0
  %v1165 = vadd.f32 %v889, %v1164
  %v1166 = vpop.f32.mrb[0].mxu0
  %1167 = vmatprep.mubr.f32.mxu0 0.0
  %1168 = vmatmul.mubr.f32.gmra.mrb[0].mxu0 %v954
  %v1169 = vpop.f32.mrb[0].mxu0
  %v1170 = vadd.f32 %v889, %v1169
  %v1171 = vpop.f32.mrb[0].mxu0
  %1172 = vmatprep.mubr.f32.mxu0 0.0
  %1173 = vmatmul.mubr.f32.gmra.mrb[0].mxu0 %v957
  %v1174 = vpop.f32.mrb[0].mxu0
  %v1175 = vadd.f32 %v889, %v1174
  %v1176 = vpop.f32.mrb[0].mxu0
  %1177 = vmatprep.mubr.f32.mxu0 0.0
  %1178 = vmatmul.mubr.f32.gmra.mrb[0].mxu0 %v960
  %v1179 = vpop.f32.mrb[0].mxu0
  %v1180 = vadd.f32 %v889, %v1179
  %v1181 = vpop.f32.mrb[0].mxu0
  %1182 = vmatprep.mubr.f32.mxu0 0.0
  %1183 = vmatmul.mubr.f32.gmra.mrb[0].mxu0 %v963
  %v1184 = vpop.f32.mrb[0].mxu0
  %v1185 = vadd.f32 %v889, %v1184
  %v1186 = vpop.f32.mrb[0].mxu0
  %1187 = vmatprep.mubr.f32.mxu0 0.0
  %1188 = vmatmul.mubr.f32.gmra.mrb[0].mxu0 %v966
  %v1189 = vpop.f32.mrb[0].mxu0
  %v1190 = vadd.f32 %v889, %v1189
  %v1191 = vpop.f32.mrb[0].mxu0
  %1192 = vmatprep.mubr.f32.mxu0 0.0
  %1193 = vmatmul.mubr.f32.gmra.mrb[0].mxu0 %v969
  %v1194 = vpop.f32.mrb[0].mxu0
  %v1195 = vadd.f32 %v889, %v1194
  %v1196 = vpop.f32.mrb[0].mxu0
  %1197 = vmatprep.mubr.f32.mxu0 0.0
  %1198 = vmatmul.mubr.f32.gmra.mrb[0].mxu0 %v972
  %v1199 = vpop.f32.mrb[0].mxu0
  %v1200 = vadd.f32 %v889, %v1199
  %v1201 = vpop.f32.mrb[0].mxu0
  %1202 = vmatprep.mubr.f32.mxu0 0.0
  %1203 = vmatmul.mubr.f32.gmra.mrb[0].mxu0 %v975
  %v1204 = vpop.f32.mrb[0].mxu0
  %v1205 = vadd.f32 %v889, %v1204
  %v1206 = vpop.f32.mrb[0].mxu0
  %1207 = vmatprep.mubr.f32.mxu0 0.0
  %1208 = vmatmul.mubr.f32.gmra.mrb[0].mxu0 %v978
  %v1209 = vpop.f32.mrb[0].mxu0
  %v1210 = vadd.f32 %v889, %v1209
  %v1211 = vpop.f32.mrb[0].mxu0
  %1212 = vmatprep.mubr.f32.mxu0 0.0
  %1213 = vmatmul.mubr.f32.gmra.mrb[0].mxu0 %v981
  %v1214 = vpop.f32.mrb[0].mxu0
  %v1215 = vadd.f32 %v889, %v1214
  %v1216 = vpop.f32.mrb[0].mxu0
  %1217 = vmatprep.mubr.f32.mxu0 0.0
  %1218 = vmatmul.mubr.f32.gmra.mrb[0].mxu0 %v984
  %v1219 = vpop.f32.mrb[0].mxu0
  %v1220 = vadd.f32 %v889, %v1219
  %v1221 = vpop.f32.mrb[0].mxu0
  %1222 = vdwg.mxu0
  %v1223 = vtanh.pop %v1065
  %v1224 = vtanh.pop %v1070
  %v1225 = vtanh.pop %v1075
  %v1226 = vtanh.pop %v1080
  %v1227 = vtanh.pop %v1085
  %v1228 = vtanh.pop %v1090
  %v1229 = vtanh.pop %v1095
  %v1230 = vtanh.pop %v1100
  %v1231 = vtanh.pop %v1105
  %v1232 = vtanh.pop %v1110
  %v1233 = vtanh.pop %v1115
  %v1234 = vtanh.pop %v1120
  %v1235 = vtanh.pop %v1125
  %v1236 = vtanh.pop %v1130
  %v1237 = vtanh.pop %v1135
  %v1238 = vtanh.pop %v1140
  %v1239 = vtanh.pop %v1145
  %v1240 = vtanh.pop %v1150
  %v1241 = vtanh.pop %v1155
  %v1242 = vtanh.pop %v1160
  %v1243 = vtanh.pop %v1165
  %v1244 = vtanh.pop %v1170
  %v1245 = vtanh.pop %v1175
  %v1246 = vtanh.pop %v1180
  %v1247 = vtanh.pop %v1185
  %v1248 = vtanh.pop %v1190
  %v1249 = vtanh.pop %v1195
  %v1250 = vtanh.pop %v1200
  %v1251 = vtanh.pop %v1205
  %v1252 = vtanh.pop %v1210
  %v1253 = vtanh.pop %v1215
  %v1254 = vtanh.pop %v1220
  %v1255 = vld [vmem:[%s1 + $0x48] sm:$0x3]
  %v1256 = vld [vmem:[%s1 + $0x5] sm:$0x1]
  %v1257 = vlaneseq
  %v1258 = vshrl.u32 %v1257, 7
  %v1259 = vsub.s32 0, %v1258
  %v1260 = vrot.slane %v1256, %v1259
  %v1262 = vsel %vm515, %v1223, 0
  %v1265 = vsel %vm515, %v1224, 0
  %v1268 = vsel %vm515, %v1225, 0
  %v1271 = vsel %vm515, %v1226, 0
  %v1274 = vsel %vm515, %v1227, 0
  %v1277 = vsel %vm515, %v1228, 0
  %v1280 = vsel %vm515, %v1229, 0
  %v1283 = vsel %vm515, %v1230, 0
  %v1286 = vsel %vm515, %v1231, 0
  %v1289 = vsel %vm515, %v1232, 0
  %v1292 = vsel %vm515, %v1233, 0
  %v1295 = vsel %vm515, %v1234, 0
  %v1298 = vsel %vm515, %v1235, 0
  %v1301 = vsel %vm515, %v1236, 0
  %v1304 = vsel %vm515, %v1237, 0
  %v1307 = vsel %vm515, %v1238, 0
  %v1310 = vsel %vm515, %v1239, 0
  %v1313 = vsel %vm515, %v1240, 0
  %v1316 = vsel %vm515, %v1241, 0
  %v1319 = vsel %vm515, %v1242, 0
  %v1322 = vsel %vm515, %v1243, 0
  %v1325 = vsel %vm515, %v1244, 0
  %v1328 = vsel %vm515, %v1245, 0
  %v1331 = vsel %vm515, %v1246, 0
  %v1334 = vsel %vm515, %v1247, 0
  %v1337 = vsel %vm515, %v1248, 0
  %v1340 = vsel %vm515, %v1249, 0
  %v1343 = vsel %vm515, %v1250, 0
  %v1346 = vsel %vm515, %v1251, 0
  %v1349 = vsel %vm515, %v1252, 0
  %v1352 = vsel %vm515, %v1253, 0
  %v1355 = vsel %vm515, %v1254, 0
  %v1358 = vsel %vm515, %v1255, 0
  %1360 = vmatprep.subr.mxu0 0.0
  %1361 = vmatpush1.xpose.msra.mxu0 %v1358
  %1362 = vmatprep.subr.mxu0 0.0
  %1363 = vmatpush1.xpose.msra.mxu0 0.0
  %1364 = vmatprep.subr.mxu0 0.0
  %1365 = vmatpush1.xpose.msra.mxu0 0.0
  %1366 = vmatprep.subr.mxu0 0.0
  %1367 = vmatpush1.xpose.msra.mxu0 0.0
  %1368 = vmatprep.subr.mxu0 0.0
  %1369 = vmatpush1.xpose.msra.mxu0 0.0
  %1370 = vmatprep.subr.mxu0 0.0
  %1371 = vmatpush1.xpose.msra.mxu0 0.0
  %1372 = vmatprep.subr.mxu0 0.0
  %1373 = vmatpush1.xpose.msra.mxu0 0.0
  %1374 = vmatprep.subr.mxu0 0.0
  %1375 = vmatpush1.xpose.msra.mxu0 0.0
  %1376 = vmatprep.subr.mxu0 0.0
  %1377 = vmatpush1.xpose.msra.mxu0 0.0
  %1378 = vmatprep.subr.mxu0 0.0
  %1379 = vmatpush1.xpose.msra.mxu0 0.0
  %1380 = vmatprep.subr.mxu0 0.0
  %1381 = vmatpush1.xpose.msra.mxu0 0.0
  %1382 = vmatprep.subr.mxu0 0.0
  %1383 = vmatpush1.xpose.msra.mxu0 0.0
  %1384 = vmatprep.subr.mxu0 0.0
  %1385 = vmatpush1.xpose.msra.mxu0 0.0
  %1386 = vmatprep.subr.mxu0 0.0
  %1387 = vmatpush1.xpose.msra.mxu0 0.0
  %1388 = vmatprep.subr.mxu0 0.0
  %1389 = vmatpush1.xpose.msra.mxu0 0.0
  %1390 = vmatprep.subr.mxu0 0.0
  %1391 = vmatpush1.xpose.msra.mxu0 0.0
  %1392 = vmatprep.subr.mxu0 0.0
  %1393 = vmatpush1.xpose.msra.mxu0 0.0
  %1394 = vmatprep.subr.mxu0 0.0
  %1395 = vmatpush1.xpose.msra.mxu0 0.0
  %1396 = vmatprep.subr.mxu0 0.0
  %1397 = vmatpush1.xpose.msra.mxu0 0.0
  %1398 = vmatprep.subr.mxu0 0.0
  %1399 = vmatpush1.xpose.msra.mxu0 0.0
  %1400 = vmatprep.subr.mxu0 0.0
  %1401 = vmatpush1.xpose.msra.mxu0 0.0
  %1402 = vmatprep.subr.mxu0 0.0
  %1403 = vmatpush1.xpose.msra.mxu0 0.0
  %1404 = vmatprep.subr.mxu0 0.0
  %1405 = vmatpush1.xpose.msra.mxu0 0.0
  %1406 = vmatprep.subr.mxu0 0.0
  %1407 = vmatpush1.xpose.msra.mxu0 0.0
  %1408 = vmatprep.subr.mxu0 0.0
  %1409 = vmatpush1.xpose.msra.mxu0 0.0
  %1410 = vmatprep.subr.mxu0 0.0
  %1411 = vmatpush1.xpose.msra.mxu0 0.0
  %1412 = vmatprep.subr.mxu0 0.0
  %1413 = vmatpush1.xpose.msra.mxu0 0.0
  %1414 = vmatprep.subr.mxu0 0.0
  %1415 = vmatpush1.xpose.msra.mxu0 0.0
  %1416 = vmatprep.subr.mxu0 0.0
  %1417 = vmatpush1.xpose.msra.mxu0 0.0
  %1418 = vmatprep.subr.mxu0 0.0
  %1419 = vmatpush1.xpose.msra.mxu0 0.0
  %1420 = vmatprep.subr.mxu0 0.0
  %1421 = vmatpush1.xpose.msra.mxu0 0.0
  %1422 = vmatprep.subr.mxu0 0.0
  %1423 = vmatpush1.xpose.msra.mxu0 0.0
  %1424 = vmatprep.mubr.f32.mxu0 0.0
  %1425 = vmatmul.mubr.f32.gmra.mrb[0].mxu0 %v1262
  %v1426 = vpop.f32.mrb[0].mxu0
  %v1427 = vadd.f32 %v1260, %v1426
  %v1428 = vpop.f32.mrb[0].mxu0
  %1429 = vmatprep.mubr.f32.mxu0 0.0
  %1430 = vmatmul.mubr.f32.gmra.mrb[0].mxu0 %v1265
  %v1431 = vpop.f32.mrb[0].mxu0
  %v1432 = vadd.f32 %v1260, %v1431
  %v1433 = vpop.f32.mrb[0].mxu0
  %1434 = vmatprep.mubr.f32.mxu0 0.0
  %1435 = vmatmul.mubr.f32.gmra.mrb[0].mxu0 %v1268
  %v1436 = vpop.f32.mrb[0].mxu0
  %v1437 = vadd.f32 %v1260, %v1436
  %v1438 = vpop.f32.mrb[0].mxu0
  %1439 = vmatprep.mubr.f32.mxu0 0.0
  %1440 = vmatmul.mubr.f32.gmra.mrb[0].mxu0 %v1271
  %v1441 = vpop.f32.mrb[0].mxu0
  %v1442 = vadd.f32 %v1260, %v1441
  %v1443 = vpop.f32.mrb[0].mxu0
  %1444 = vmatprep.mubr.f32.mxu0 0.0
  %1445 = vmatmul.mubr.f32.gmra.mrb[0].mxu0 %v1274
  %v1446 = vpop.f32.mrb[0].mxu0
  %v1447 = vadd.f32 %v1260, %v1446
  %v1448 = vpop.f32.mrb[0].mxu0
  %1449 = vmatprep.mubr.f32.mxu0 0.0
  %1450 = vmatmul.mubr.f32.gmra.mrb[0].mxu0 %v1277
  %v1451 = vpop.f32.mrb[0].mxu0
  %v1452 = vadd.f32 %v1260, %v1451
  %v1453 = vpop.f32.mrb[0].mxu0
  %1454 = vmatprep.mubr.f32.mxu0 0.0
  %1455 = vmatmul.mubr.f32.gmra.mrb[0].mxu0 %v1280
  %v1456 = vpop.f32.mrb[0].mxu0
  %v1457 = vadd.f32 %v1260, %v1456
  %v1458 = vpop.f32.mrb[0].mxu0
  %1459 = vmatprep.mubr.f32.mxu0 0.0
  %1460 = vmatmul.mubr.f32.gmra.mrb[0].mxu0 %v1283
  %v1461 = vpop.f32.mrb[0].mxu0
  %v1462 = vadd.f32 %v1260, %v1461
  %v1463 = vpop.f32.mrb[0].mxu0
  %1464 = vmatprep.mubr.f32.mxu0 0.0
  %1465 = vmatmul.mubr.f32.gmra.mrb[0].mxu0 %v1286
  %v1466 = vpop.f32.mrb[0].mxu0
  %v1467 = vadd.f32 %v1260, %v1466
  %v1468 = vpop.f32.mrb[0].mxu0
  %1469 = vmatprep.mubr.f32.mxu0 0.0
  %1470 = vmatmul.mubr.f32.gmra.mrb[0].mxu0 %v1289
  %v1471 = vpop.f32.mrb[0].mxu0
  %v1472 = vadd.f32 %v1260, %v1471
  %v1473 = vpop.f32.mrb[0].mxu0
  %1474 = vmatprep.mubr.f32.mxu0 0.0
  %1475 = vmatmul.mubr.f32.gmra.mrb[0].mxu0 %v1292
  %v1476 = vpop.f32.mrb[0].mxu0
  %v1477 = vadd.f32 %v1260, %v1476
  %v1478 = vpop.f32.mrb[0].mxu0
  %1479 = vmatprep.mubr.f32.mxu0 0.0
  %1480 = vmatmul.mubr.f32.gmra.mrb[0].mxu0 %v1295
  %v1481 = vpop.f32.mrb[0].mxu0
  %v1482 = vadd.f32 %v1260, %v1481
  %v1483 = vpop.f32.mrb[0].mxu0
  %1484 = vmatprep.mubr.f32.mxu0 0.0
  %1485 = vmatmul.mubr.f32.gmra.mrb[0].mxu0 %v1298
  %v1486 = vpop.f32.mrb[0].mxu0
  %v1487 = vadd.f32 %v1260, %v1486
  %v1488 = vpop.f32.mrb[0].mxu0
  %1489 = vmatprep.mubr.f32.mxu0 0.0
  %1490 = vmatmul.mubr.f32.gmra.mrb[0].mxu0 %v1301
  %v1491 = vpop.f32.mrb[0].mxu0
  %v1492 = vadd.f32 %v1260, %v1491
  %v1493 = vpop.f32.mrb[0].mxu0
  %1494 = vmatprep.mubr.f32.mxu0 0.0
  %1495 = vmatmul.mubr.f32.gmra.mrb[0].mxu0 %v1304
  %v1496 = vpop.f32.mrb[0].mxu0
  %v1497 = vadd.f32 %v1260, %v1496
  %v1498 = vpop.f32.mrb[0].mxu0
  %1499 = vmatprep.mubr.f32.mxu0 0.0
  %1500 = vmatmul.mubr.f32.gmra.mrb[0].mxu0 %v1307
  %v1501 = vpop.f32.mrb[0].mxu0
  %v1502 = vadd.f32 %v1260, %v1501
  %v1503 = vpop.f32.mrb[0].mxu0
  %1504 = vmatprep.mubr.f32.mxu0 0.0
  %1505 = vmatmul.mubr.f32.gmra.mrb[0].mxu0 %v1310
  %v1506 = vpop.f32.mrb[0].mxu0
  %v1507 = vadd.f32 %v1260, %v1506
  %v1508 = vpop.f32.mrb[0].mxu0
  %1509 = vmatprep.mubr.f32.mxu0 0.0
  %1510 = vmatmul.mubr.f32.gmra.mrb[0].mxu0 %v1313
  %v1511 = vpop.f32.mrb[0].mxu0
  %v1512 = vadd.f32 %v1260, %v1511
  %v1513 = vpop.f32.mrb[0].mxu0
  %1514 = vmatprep.mubr.f32.mxu0 0.0
  %1515 = vmatmul.mubr.f32.gmra.mrb[0].mxu0 %v1316
  %v1516 = vpop.f32.mrb[0].mxu0
  %v1517 = vadd.f32 %v1260, %v1516
  %v1518 = vpop.f32.mrb[0].mxu0
  %1519 = vmatprep.mubr.f32.mxu0 0.0
  %1520 = vmatmul.mubr.f32.gmra.mrb[0].mxu0 %v1319
  %v1521 = vpop.f32.mrb[0].mxu0
  %v1522 = vadd.f32 %v1260, %v1521
  %v1523 = vpop.f32.mrb[0].mxu0
  %1524 = vmatprep.mubr.f32.mxu0 0.0
  %1525 = vmatmul.mubr.f32.gmra.mrb[0].mxu0 %v1322
  %v1526 = vpop.f32.mrb[0].mxu0
  %v1527 = vadd.f32 %v1260, %v1526
  %v1528 = vpop.f32.mrb[0].mxu0
  %1529 = vmatprep.mubr.f32.mxu0 0.0
  %1530 = vmatmul.mubr.f32.gmra.mrb[0].mxu0 %v1325
  %v1531 = vpop.f32.mrb[0].mxu0
  %v1532 = vadd.f32 %v1260, %v1531
  %v1533 = vpop.f32.mrb[0].mxu0
  %1534 = vmatprep.mubr.f32.mxu0 0.0
  %1535 = vmatmul.mubr.f32.gmra.mrb[0].mxu0 %v1328
  %v1536 = vpop.f32.mrb[0].mxu0
  %v1537 = vadd.f32 %v1260, %v1536
  %v1538 = vpop.f32.mrb[0].mxu0
  %1539 = vmatprep.mubr.f32.mxu0 0.0
  %1540 = vmatmul.mubr.f32.gmra.mrb[0].mxu0 %v1331
  %v1541 = vpop.f32.mrb[0].mxu0
  %v1542 = vadd.f32 %v1260, %v1541
  %v1543 = vpop.f32.mrb[0].mxu0
  %1544 = vmatprep.mubr.f32.mxu0 0.0
  %1545 = vmatmul.mubr.f32.gmra.mrb[0].mxu0 %v1334
  %v1546 = vpop.f32.mrb[0].mxu0
  %v1547 = vadd.f32 %v1260, %v1546
  %v1548 = vpop.f32.mrb[0].mxu0
  %1549 = vmatprep.mubr.f32.mxu0 0.0
  %1550 = vmatmul.mubr.f32.gmra.mrb[0].mxu0 %v1337
  %v1551 = vpop.f32.mrb[0].mxu0
  %v1552 = vadd.f32 %v1260, %v1551
  %v1553 = vpop.f32.mrb[0].mxu0
  %1554 = vmatprep.mubr.f32.mxu0 0.0
  %1555 = vmatmul.mubr.f32.gmra.mrb[0].mxu0 %v1340
  %v1556 = vpop.f32.mrb[0].mxu0
  %v1557 = vadd.f32 %v1260, %v1556
  %v1558 = vpop.f32.mrb[0].mxu0
  %1559 = vmatprep.mubr.f32.mxu0 0.0
  %1560 = vmatmul.mubr.f32.gmra.mrb[0].mxu0 %v1343
  %v1561 = vpop.f32.mrb[0].mxu0
  %v1562 = vadd.f32 %v1260, %v1561
  %v1563 = vpop.f32.mrb[0].mxu0
  %1564 = vmatprep.mubr.f32.mxu0 0.0
  %1565 = vmatmul.mubr.f32.gmra.mrb[0].mxu0 %v1346
  %v1566 = vpop.f32.mrb[0].mxu0
  %v1567 = vadd.f32 %v1260, %v1566
  %v1568 = vpop.f32.mrb[0].mxu0
  %1569 = vmatprep.mubr.f32.mxu0 0.0
  %1570 = vmatmul.mubr.f32.gmra.mrb[0].mxu0 %v1349
  %v1571 = vpop.f32.mrb[0].mxu0
  %v1572 = vadd.f32 %v1260, %v1571
  %v1573 = vpop.f32.mrb[0].mxu0
  %1574 = vmatprep.mubr.f32.mxu0 0.0
  %1575 = vmatmul.mubr.f32.gmra.mrb[0].mxu0 %v1352
  %v1576 = vpop.f32.mrb[0].mxu0
  %v1577 = vadd.f32 %v1260, %v1576
  %v1578 = vpop.f32.mrb[0].mxu0
  %1579 = vmatprep.mubr.f32.mxu0 0.0
  %1580 = vmatmul.mubr.f32.gmra.mrb[0].mxu0 %v1355
  %v1581 = vpop.f32.mrb[0].mxu0
  %v1582 = vadd.f32 %v1260, %v1581
  %v1583 = vpop.f32.mrb[0].mxu0
  %1584 = vdwg.mxu0
  %vm1585 = vcmask 15360
  %1586 = vst.msk [vmem:[%s2] sm:$0xff] %vm1585, %v1427
  %1587 = vst.msk [vmem:[%s2 + $0x8] sm:$0xff] %vm1585, %v1432
  %1588 = vst.msk [vmem:[%s2 + $0x10] sm:$0xff] %vm1585, %v1437
  %1589 = vst.msk [vmem:[%s2 + $0x18] sm:$0xff] %vm1585, %v1442
  %1590 = vst.msk [vmem:[%s2 + $0x20] sm:$0xff] %vm1585, %v1447
  %1591 = vst.msk [vmem:[%s2 + $0x28] sm:$0xff] %vm1585, %v1452
  %1592 = vst.msk [vmem:[%s2 + $0x30] sm:$0xff] %vm1585, %v1457
  %1593 = vst.msk [vmem:[%s2 + $0x38] sm:$0xff] %vm1585, %v1462
  %1594 = vst.msk [vmem:[%s2 + $0x40] sm:$0xff] %vm1585, %v1467
  %1595 = vst.msk [vmem:[%s2 + $0x48] sm:$0xff] %vm1585, %v1472
  %1596 = vst.msk [vmem:[%s2 + $0x50] sm:$0xff] %vm1585, %v1477
  %1597 = vst.msk [vmem:[%s2 + $0x58] sm:$0xff] %vm1585, %v1482
  %1598 = vst.msk [vmem:[%s2 + $0x60] sm:$0xff] %vm1585, %v1487
  %1599 = vst.msk [vmem:[%s2 + $0x68] sm:$0xff] %vm1585, %v1492
  %1600 = vst.msk [vmem:[%s2 + $0x70] sm:$0xff] %vm1585, %v1497
  %1601 = vst.msk [vmem:[%s2 + $0x78] sm:$0xff] %vm1585, %v1502
  %1602 = vst.msk [vmem:[%s2 + $0x80] sm:$0xff] %vm1585, %v1507
  %1603 = vst.msk [vmem:[%s2 + $0x88] sm:$0xff] %vm1585, %v1512
  %1604 = vst.msk [vmem:[%s2 + $0x90] sm:$0xff] %vm1585, %v1517
  %1605 = vst.msk [vmem:[%s2 + $0x98] sm:$0xff] %vm1585, %v1522
  %1606 = vst.msk [vmem:[%s2 + $0xa0] sm:$0xff] %vm1585, %v1527
  %1607 = vst.msk [vmem:[%s2 + $0xa8] sm:$0xff] %vm1585, %v1532
  %1608 = vst.msk [vmem:[%s2 + $0xb0] sm:$0xff] %vm1585, %v1537
  %1609 = vst.msk [vmem:[%s2 + $0xb8] sm:$0xff] %vm1585, %v1542
  %1610 = vst.msk [vmem:[%s2 + $0xc0] sm:$0xff] %vm1585, %v1547
  %1611 = vst.msk [vmem:[%s2 + $0xc8] sm:$0xff] %vm1585, %v1552
  %1612 = vst.msk [vmem:[%s2 + $0xd0] sm:$0xff] %vm1585, %v1557
  %1613 = vst.msk [vmem:[%s2 + $0xd8] sm:$0xff] %vm1585, %v1562
  %1614 = vst.msk [vmem:[%s2 + $0xe0] sm:$0xff] %vm1585, %v1567
  %1615 = vst.msk [vmem:[%s2 + $0xe8] sm:$0xff] %vm1585, %v1572
  %1616 = vst.msk [vmem:[%s2 + $0xf0] sm:$0xff] %vm1585, %v1577
  %1617 = vst.msk [vmem:[%s2 + $0xf8] sm:$0xff] %vm1585, %v1582
  // Predicated region
  $region10: #{tpu_custom_call.1} parent=0 // pred_check
    _
  $region11: #{tpu_custom_call.1} parent=0 // pred_check_branch
    %1619 = sbr.rel (0) target = $region13
  $region12: #{tpu_custom_call.1} parent=0 // pred_region
    _
  $region13: #{tpu_custom_call.1} parent=0 // pred_fallthru
    _
  // Predicated region
  $region14: #{tpu_custom_call.1} parent=0 // pred_check
    _
  $region15: #{tpu_custom_call.1} parent=0 // pred_check_branch
    %1621 = sbr.rel (0) target = $region17
  $region16: #{tpu_custom_call.1} parent=0 // pred_region
    _
  $region17: #{tpu_custom_call.1} parent=0 // pred_fallthru
    _

</llo_original>
